<compile_context>
chip_gen: v6e
topology: v6e:2x2x1
jax: 0.10.0
libtpu: 0.0.40
codegen_flags: <defaults>
</compile_context>

<pallas_src>
import jax
import jax.numpy as jnp
from jax import lax
from jax.experimental import pallas as pl
from jax.experimental.pallas import tpu as pltpu


# Explicit capability check (review: no broad try/except config fallback).
_HAS_BUFFERED = hasattr(pl, "Buffered")


def _round_up(a, m):
    return ((a + m - 1) // m) * m


def _pick_chunk(d4):
    """Static chunk of the hidden (4D) dim for the MLP loop."""
    if d4 <= 1024:
        return d4
    if d4 % 1024 == 0:
        return 1024
    if d4 % 512 == 0:
        return 512
    return d4


def _make_adapter_kernel(chunk):
    """out = x + W2(QuickGELU(W1(LN(x)) + b1)) + b2 + image_feature."""

    def kernel(x_ref, gbb_ref, w1_ref, b1_ref, w2_ref, img_ref, out_ref):
        x = x_ref[...].astype(jnp.float32)
        tile_n, d = x.shape
        d4 = w1_ref.shape[-1]
        inv_d = 1.0 / d

        gbb = gbb_ref[...].astype(jnp.float32)          # (3, D): gamma, beta, b2
        gamma, beta, b2 = gbb[0:1], gbb[1:2], gbb[2:3]

        # LayerNorm (torch default eps=1e-5): single pass (sum, sum of squares),
        # variance clamped at 0 to avoid rsqrt NaN on near-constant rows.
        s = jnp.sum(x, axis=-1, keepdims=True)
        sq = jnp.sum(x * x, axis=-1, keepdims=True)
        mean = s * inv_d
        var = jnp.maximum(sq * inv_d - mean * mean, 0.0)
        y = (x - mean) * jax.lax.rsqrt(var + 1e-5)
        y = (y * gamma + beta).astype(jnp.bfloat16)      # MXU operand

        n_chunks = d4 // chunk
        if n_chunks == 1:
            h = jnp.dot(y, w1_ref[...],
                        preferred_element_type=jnp.float32) + b1_ref[...]
            h = h * jax.nn.sigmoid(1.702 * h)            # QuickGELU (EUP + VPU)
            z = jnp.dot(h.astype(jnp.bfloat16), w2_ref[...],
                        preferred_element_type=jnp.float32)
        else:
            # Chunk over the 4D hidden dim: f32 GELU temp stays tile_n x chunk,
            # and chunk k's GELU overlaps chunk k+1's matmul.
            def body(c, z_acc):
                off = pl.multiple_of(c * chunk, chunk)
                h = jnp.dot(y, w1_ref[:, pl.ds(off, chunk)],
                            preferred_element_type=jnp.float32)
                h = h + b1_ref[:, pl.ds(off, chunk)]
                h = h * jax.nn.sigmoid(1.702 * h)
                return z_acc + jnp.dot(h.astype(jnp.bfloat16),
                                       w2_ref[pl.ds(off, chunk), :],
                                       preferred_element_type=jnp.float32)

            z = lax.fori_loop(0, n_chunks, body,
                              jnp.zeros((tile_n, d), jnp.float32), unroll=True)

        # person-feature residual + adapter bias + image-feature residual.
        out_ref[...] = (x + z + b2 + img_ref[...].astype(jnp.float32)
                        ).astype(out_ref.dtype)

    return kernel


def _choose_tile(n, max_tile_n):
    """Small N -> one grid step of round_up(N, 8) rows.
       Large N -> padding-aware tile from {512,256,128,64}, prefer larger."""
    tile_min = 256                       # one full MXU-height tile (v6e/v7x)
    if n < 2 * tile_min:
        t = _round_up(max(n, 8), 8)
        return t, t
    cands = [t for t in (512, 256, 128, 64) if t <= max_tile_n] or [64]
    tile = min(cands, key=lambda t: (_round_up(n, t) - n, -t))
    return tile, _round_up(n, tile)


def _vmem_limit_bytes(tile_n, d, d4, chunk, n_steps):
    """Right-size the VMEM limit from the actual footprint (review item)."""
    weights = 2 * d * d4 * 2               # w1 + w2, bf16, single-buffered
    consts = (3 * d + d4) * 4              # gamma/beta/b2 pack + b1
    bufs = 2 if n_steps > 1 else 1         # row streams double-buffer only if pipelined
    rows = 3 * tile_n * d * 4 * bufs       # person / image / out tiles
    temps = tile_n * (chunk + d) * 4       # GELU chunk + f32 accumulator
    est = weights + consts + rows + temps
    # 2x headroom for compiler scratch; never the whole per-TC VMEM (v7x = 64 MiB),
    # capped at 64 MiB (v5e/v6e have 128 MiB physical).
    return int(min(max(2 * est + (8 << 20), 32 << 20), 64 << 20))


def _const_spec(r, c):
    """Grid-invariant operand: single VMEM buffer when the build supports it."""
    if _HAS_BUFFERED:
        return pl.BlockSpec((r, c), lambda i: (0, 0),
                            pipeline_mode=pl.Buffered(1))
    return pl.BlockSpec((r, c), lambda i: (0, 0))


def _build_adapter_call(n_pad, d, d4, tile_n, chunk, n_steps):
    row_spec = pl.BlockSpec((tile_n, d), lambda i: (i, 0))
    # Megacore split only when per-TC matmul work can hide the duplicated
    # per-TC weight fetch; otherwise keep a single stream ("arbitrary").
    use_parallel = n_steps > 1 and n_pad >= 1024
    return pl.pallas_call(
        _make_adapter_kernel(chunk),
        out_shape=jax.ShapeDtypeStruct((n_pad, d), jnp.float32),
        grid_spec=pltpu.PrefetchScalarGridSpec(
            num_scalar_prefetch=0,
            grid=(n_steps,),
            in_specs=[
                row_spec,               # person features        [tile_n, D]
                _const_spec(3, d),      # gamma / beta / b2 pack [3, D]
                _const_spec(d, d4),     # w1 (bf16)              [D, 4D]
                _const_spec(1, d4),     # b1                     [1, 4D]
                _const_spec(d4, d),     # w2 (bf16)              [4D, D]
                row_spec,               # image features         [tile_n, D]
            ],
            out_specs=row_spec,
        ),
        compiler_params=pltpu.CompilerParams(
            dimension_semantics=("parallel",) if use_parallel else ("arbitrary",),
            vmem_limit_bytes=_vmem_limit_bytes(tile_n, d, d4, chunk, n_steps)),
    )


def clip_adapter_fused(person_feat, image_feat, params, *, max_tile_n=512):
    """person_feat, image_feat: [N, D] float32.  Returns [N, D] float32."""
    n, d = person_feat.shape
    d4 = params["w1"].shape[1]

    tile_n, n_pad = _choose_tile(n, max_tile_n)
    if n_pad != n:                      # ragged person counts: pad, slice back
        pad = ((0, n_pad - n), (0, 0))
        person_feat = jnp.pad(person_feat, pad)
        image_feat = jnp.pad(image_feat, pad)

    gbb = jnp.concatenate([params["gamma"], params["beta"], params["b2"]], axis=0)
    w1 = params["w1"].astype(jnp.bfloat16)
    w2 = params["w2"].astype(jnp.bfloat16)

    n_steps = n_pad // tile_n
    chunk = _pick_chunk(d4)
    out = _build_adapter_call(n_pad, d, d4, tile_n, chunk, n_steps)(
        person_feat, gbb, w1, params["b1"], w2, image_feat)
    return out[:n]


def init_params(key, d):
    """Deterministic adapter / layernorm parameters (shapes from __init__)."""
    k1, k2, k3, k4 = jax.random.split(key, 4)
    d4 = 4 * d
    return {
        "gamma": jnp.ones((1, d), jnp.float32),
        "beta": jnp.zeros((1, d), jnp.float32),
        "w1": jax.random.normal(k1, (d, d4), jnp.float32) * 0.02,
        "b1": jax.random.normal(k2, (1, d4), jnp.float32) * 0.02,
        "w2": jax.random.normal(k3, (d4, d), jnp.float32) * 0.02,
        "b2": jax.random.normal(k4, (1, d), jnp.float32) * 0.02,
    }


def reference(person_feat, image_feat, p, *, bf16_matmuls):
    x = person_feat
    mean = jnp.mean(x, axis=-1, keepdims=True)
    var = jnp.mean((x - mean) ** 2, axis=-1, keepdims=True)
    y = (x - mean) * jax.lax.rsqrt(var + 1e-5) * p["gamma"] + p["beta"]
    if bf16_matmuls:
        h = jnp.dot(y.astype(jnp.bfloat16), p["w1"].astype(jnp.bfloat16),
                    preferred_element_type=jnp.float32) + p["b1"]
    else:
        h = y @ p["w1"] + p["b1"]
    h = h * jax.nn.sigmoid(1.702 * h)
    if bf16_matmuls:
        z = jnp.dot(h.astype(jnp.bfloat16), p["w2"].astype(jnp.bfloat16),
                    preferred_element_type=jnp.float32) + p["b2"]
    else:
        z = h @ p["w2"] + p["b2"]
    return x + z + image_feat


def _run_case(key, n, d, a, dt):
    k_param, k_person, k_img, k_text = jax.random.split(key, 4)
    params = init_params(k_param, d)

    # Stand-ins for CLIP encoder outputs (see TODO(synk) above).
    person_feature = jax.random.normal(k_person, (n, d), jnp.float32)
    image_feature = jax.random.normal(k_img, (n, d), jnp.float32)
    tFeature = jax.random.normal(k_text, (a, dt), jnp.float32)

    # Hot path in Pallas: LN -> adapter MLP (QuickGELU) -> residual -> +image.
    interaction_feature = clip_adapter_fused(person_feature, image_feature, params)
    interaction_feature = jax.block_until_ready(interaction_feature)

    # Glue: text_features = tFeature.expand(person_num, -1, -1)
    text_features = jnp.broadcast_to(tFeature[None, :, :], (n, a, dt))
    text_features = jax.block_until_ready(text_features)

    # Correctness: exact-path (bf16 matmul / f32 accumulate) reference tight,
    # plus sanity check vs the pure-f32 reference at looser tolerance.
    ref_bf16 = reference(person_feature, image_feature, params, bf16_matmuls=True)
    ref_f32 = reference(person_feature, image_feature, params, bf16_matmuls=False)
    assert jnp.allclose(interaction_feature, ref_bf16, atol=5e-3, rtol=5e-3), \
        f"mismatch vs bf16-matmul reference (N={n}, D={d})"
    assert jnp.allclose(interaction_feature, ref_f32, atol=5e-2, rtol=5e-2), \
        f"mismatch vs f32 reference (N={n}, D={d})"
    assert interaction_feature.shape == (n, d)
    assert text_features.shape == (n, a, dt)


if __name__ == "__main__":
    key = jax.random.PRNGKey(0)
    k1, k2 = jax.random.split(key)

    # Small / ragged case: 13 person boxes, D=128 (lane-dense) — exercises the
    # single-grid-step path (tile_n = 16). Real ViT-B/16 would be D=768.
    _run_case(k1, 13, 128, 4, 128)

    # Larger case: 600 rows, D=256 — exercises the padding-aware multi-step
    # path (tile_n = 128) and the d4-chunked MLP loop (d4 = 1024, chunk = 512).
    _run_case(k2, 600, 256, 4, 128)

    print("KERNEL_OK")
</pallas_src>

<mosaic_0001>
module attributes {stable_mosaic.version = 11 : i64} {
  func.func @kernel(%arg0: i32, %arg1: memref<16x128xf32, #tpu.memory_space<vmem>>, %arg2: memref<3x128xf32, #tpu.memory_space<vmem>>, %arg3: memref<128x512xbf16, #tpu.memory_space<vmem>>, %arg4: memref<1x512xf32, #tpu.memory_space<vmem>>, %arg5: memref<512x128xbf16, #tpu.memory_space<vmem>>, %arg6: memref<16x128xf32, #tpu.memory_space<vmem>>, %arg7: memref<16x128xf32, #tpu.memory_space<vmem>>) attributes {dimension_semantics = [#tpu.dimension_semantics<arbitrary>], iteration_bounds = array<i64: 1>, scalar_prefetch = 0 : i64, scratch_operands = 0 : i64, tpu.core_type = #tpu.core_type<tc>, window_params = [{transform_indices = @transform_0, window_bounds = array<i64: 16, 128>}, {pipeline_mode = #tpu.pipeline_mode<synchronous>, transform_indices = @transform_1, window_bounds = array<i64: 3, 128>}, {pipeline_mode = #tpu.pipeline_mode<synchronous>, transform_indices = @transform_2, window_bounds = array<i64: 128, 512>}, {pipeline_mode = #tpu.pipeline_mode<synchronous>, transform_indices = @transform_3, window_bounds = array<i64: 1, 512>}, {pipeline_mode = #tpu.pipeline_mode<synchronous>, transform_indices = @transform_4, window_bounds = array<i64: 512, 128>}, {transform_indices = @transform_5, window_bounds = array<i64: 16, 128>}, {transform_indices = @transform_6, window_bounds = array<i64: 16, 128>}]} {
    %c0 = arith.constant 0 : index
    %c0_0 = arith.constant 0 : index
    %0 = vector.load %arg1[%c0, %c0_0] : memref<16x128xf32, #tpu.memory_space<vmem>>, vector<16x128xf32>
    %c0_1 = arith.constant 0 : index
    %c0_2 = arith.constant 0 : index
    %1 = vector.load %arg2[%c0_1, %c0_2] : memref<3x128xf32, #tpu.memory_space<vmem>>, vector<3x128xf32>
    %2 = vector.extract_strided_slice %1 {offsets = [0, 0], sizes = [1, 128], strides = [1, 1]} : vector<3x128xf32> to vector<1x128xf32>
    %3 = vector.extract_strided_slice %1 {offsets = [1, 0], sizes = [1, 128], strides = [1, 1]} : vector<3x128xf32> to vector<1x128xf32>
    %4 = vector.extract_strided_slice %1 {offsets = [2, 0], sizes = [1, 128], strides = [1, 1]} : vector<3x128xf32> to vector<1x128xf32>
    %cst = arith.constant dense<0.000000e+00> : vector<16xf32>
    %5 = vector.multi_reduction <add>, %0, %cst [1] : vector<16x128xf32> to vector<16xf32>
    %6 = vector.shape_cast %5 : vector<16xf32> to vector<16x1xf32>
    %7 = arith.mulf %0, %0 : vector<16x128xf32>
    %cst_3 = arith.constant dense<0.000000e+00> : vector<16xf32>
    %8 = vector.multi_reduction <add>, %7, %cst_3 [1] : vector<16x128xf32> to vector<16xf32>
    %9 = vector.shape_cast %8 : vector<16xf32> to vector<16x1xf32>
    %cst_4 = arith.constant 7.812500e-03 : f32
    %10 = vector.broadcast %cst_4 : f32 to vector<16x1xf32>
    %11 = arith.mulf %6, %10 : vector<16x1xf32>
    %cst_5 = arith.constant 7.812500e-03 : f32
    %12 = vector.broadcast %cst_5 : f32 to vector<16x1xf32>
    %13 = arith.mulf %9, %12 : vector<16x1xf32>
    %14 = arith.mulf %11, %11 : vector<16x1xf32>
    %15 = arith.subf %13, %14 : vector<16x1xf32>
    %cst_6 = arith.constant 0.000000e+00 : f32
    %16 = vector.broadcast %cst_6 : f32 to vector<16x1xf32>
    %17 = arith.maximumf %15, %16 : vector<16x1xf32>
    %18 = vector.broadcast %11 : vector<16x1xf32> to vector<16x128xf32>
    %19 = arith.subf %0, %18 : vector<16x128xf32>
    %cst_7 = arith.constant 9.99999974E-6 : f32
    %20 = vector.broadcast %cst_7 : f32 to vector<16x1xf32>
    %21 = arith.addf %17, %20 : vector<16x1xf32>
    %22 = math.rsqrt %21 : vector<16x1xf32>
    %23 = vector.broadcast %22 : vector<16x1xf32> to vector<16x128xf32>
    %24 = arith.mulf %19, %23 : vector<16x128xf32>
    %25 = vector.broadcast %2 : vector<1x128xf32> to vector<16x128xf32>
    %26 = arith.mulf %24, %25 : vector<16x128xf32>
    %27 = vector.broadcast %3 : vector<1x128xf32> to vector<16x128xf32>
    %28 = arith.addf %26, %27 : vector<16x128xf32>
    %29 = arith.truncf %28 : vector<16x128xf32> to vector<16x128xbf16>
    %c0_8 = arith.constant 0 : index
    %c0_9 = arith.constant 0 : index
    %30 = vector.load %arg3[%c0_8, %c0_9] : memref<128x512xbf16, #tpu.memory_space<vmem>>, vector<128x512xbf16>
    %cst_10 = arith.constant dense<0.000000e+00> : vector<16x512xf32>
    %31 = tpu.matmul %29, %30, %cst_10 {dimension_numbers = #tpu.dot_dimension_numbers<[1], [0], [0], [1], [0, 0, 1, 1], [], []>} : vector<16x128xbf16>, vector<128x512xbf16>, vector<16x512xf32> -> vector<16x512xf32>
    %c0_11 = arith.constant 0 : index
    %c0_12 = arith.constant 0 : index
    %32 = vector.load %arg4[%c0_11, %c0_12] : memref<1x512xf32, #tpu.memory_space<vmem>>, vector<1x512xf32>
    %33 = vector.broadcast %32 : vector<1x512xf32> to vector<16x512xf32>
    %34 = arith.addf %31, %33 : vector<16x512xf32>
    %cst_13 = arith.constant 1.702000e+00 : f32
    %35 = vector.broadcast %cst_13 : f32 to vector<16x512xf32>
    %36 = arith.mulf %35, %34 : vector<16x512xf32>
    %37 = arith.negf %36 : vector<16x512xf32>
    %38 = math.exp %37 : vector<16x512xf32>
    %cst_14 = arith.constant 1.000000e+00 : f32
    %39 = vector.broadcast %cst_14 : f32 to vector<16x512xf32>
    %40 = arith.addf %39, %38 : vector<16x512xf32>
    %41 = arith.divf %39, %40 : vector<16x512xf32>
    %42 = arith.mulf %34, %41 : vector<16x512xf32>
    %43 = arith.truncf %42 : vector<16x512xf32> to vector<16x512xbf16>
    %c0_15 = arith.constant 0 : index
    %c0_16 = arith.constant 0 : index
    %44 = vector.load %arg5[%c0_15, %c0_16] : memref<512x128xbf16, #tpu.memory_space<vmem>>, vector<512x128xbf16>
    %cst_17 = arith.constant dense<0.000000e+00> : vector<16x128xf32>
    %45 = tpu.matmul %43, %44, %cst_17 {dimension_numbers = #tpu.dot_dimension_numbers<[1], [0], [0], [1], [0, 0, 1, 1], [], []>} : vector<16x512xbf16>, vector<512x128xbf16>, vector<16x128xf32> -> vector<16x128xf32>
    %46 = arith.addf %0, %45 : vector<16x128xf32>
    %47 = vector.broadcast %4 : vector<1x128xf32> to vector<16x128xf32>
    %48 = arith.addf %46, %47 : vector<16x128xf32>
    %c0_18 = arith.constant 0 : index
    %c0_19 = arith.constant 0 : index
    %49 = vector.load %arg6[%c0_18, %c0_19] : memref<16x128xf32, #tpu.memory_space<vmem>>, vector<16x128xf32>
    %50 = arith.addf %48, %49 : vector<16x128xf32>
    %c0_20 = arith.constant 0 : index
    %c0_21 = arith.constant 0 : index
    %51 = vector.load %arg7[%c0_20, %c0_21] : memref<16x128xf32, #tpu.memory_space<vmem>>, vector<16x128xf32>
    tpu.vector_store %arg7[%c0_20, %c0_21], %50 {strides = array<i32>} : memref<16x128xf32, #tpu.memory_space<vmem>>, vector<16x128xf32>,
    return
  }
  func.func @transform_0(%arg0: i32) -> (i32, i32) {
    %c0_i32 = arith.constant 0 : i32
    %c0_i32_0 = arith.constant 0 : i32
    return %arg0, %c0_i32 : i32, i32
  }
  func.func @transform_1(%arg0: i32) -> (i32, i32) {
    %c0_i32 = arith.constant 0 : i32
    %c0_i32_0 = arith.constant 0 : i32
    %c0_i32_1 = arith.constant 0 : i32
    return %c0_i32, %c0_i32_0 : i32, i32
  }
  func.func @transform_2(%arg0: i32) -> (i32, i32) {
    %c0_i32 = arith.constant 0 : i32
    %c0_i32_0 = arith.constant 0 : i32
    %c0_i32_1 = arith.constant 0 : i32
    return %c0_i32, %c0_i32_0 : i32, i32
  }
  func.func @transform_3(%arg0: i32) -> (i32, i32) {
    %c0_i32 = arith.constant 0 : i32
    %c0_i32_0 = arith.constant 0 : i32
    %c0_i32_1 = arith.constant 0 : i32
    return %c0_i32, %c0_i32_0 : i32, i32
  }
  func.func @transform_4(%arg0: i32) -> (i32, i32) {
    %c0_i32 = arith.constant 0 : i32
    %c0_i32_0 = arith.constant 0 : i32
    %c0_i32_1 = arith.constant 0 : i32
    return %c0_i32, %c0_i32_0 : i32, i32
  }
  func.func @transform_5(%arg0: i32) -> (i32, i32) {
    %c0_i32 = arith.constant 0 : i32
    %c0_i32_0 = arith.constant 0 : i32
    return %arg0, %c0_i32 : i32, i32
  }
  func.func @transform_6(%arg0: i32) -> (i32, i32) {
    %c0_i32 = arith.constant 0 : i32
    %c0_i32_0 = arith.constant 0 : i32
    return %arg0, %c0_i32 : i32, i32
  }
}

</mosaic_0001>

<llo_original>
// kernel: tpu_custom_call.1
$region0: #{tpu_custom_call.1}
  #allocation0 [shape = 'u32[]', space=smem, size = 0x4, offset = 0x4, fixed_abs, tag = 'smem constant byte address 0x4 - core index']
  #allocation1 [shape = 'u32[144,128]{1,0:T(1,128)}', space=vmem, size = 0x12000, scoped, tag = 'internal scratch']
  %s0 = inlined_call_operand.hbm [shape: f32[16,128], index: 0, kind: input, shape index: {}]
  %s1 = inlined_call_operand.hbm [shape: f32[3,128], index: 1, kind: input, shape index: {}]
  %s2 = inlined_call_operand.hbm [shape: bf16[128,512], index: 2, kind: input, shape index: {}]
  %s3 = inlined_call_operand.vmem [shape: f32[1,512], index: 3, kind: input, shape index: {}]
  %s4 = inlined_call_operand.hbm [shape: bf16[512,128], index: 4, kind: input, shape index: {}]
  %s5 = inlined_call_operand.hbm [shape: f32[16,128], index: 5, kind: input, shape index: {}]
  %s6 = inlined_call_operand.hbm [shape: f32[16,128], index: 6, kind: output, shape index: {}]
  %s7 = sld [smem:[#allocation0]]
  $region54: #{tpu_custom_call.1} parent=0
    _
  %s9 = ssub.s32 1, %s7
  %s10 = scalar_select 0, %s9, %s7
  $region1: #{tpu_custom_call.1} parent=0
    #allocation2 [shape = 'u8[8192]{0}', space=vmem, size = 0x2000, scoped, tag = 'input window, operand 0, single buffered']
    #allocation3 [shape = 's32[1]{0}', space=sflag, size = 0x4, scoped, tag = 'scoped memory for tpu_custom_call.1']
    #allocation4 [shape = 's32[1]{0}', space=sflag, size = 0x4, scoped, tag = 'scoped memory for tpu_custom_call.1']
    #allocation5 [shape = 'u8[2048]{0}', space=vmem, size = 0x800, scoped, tag = 'input window, operand 1, single buffered']
    #allocation6 [shape = 's32[1]{0}', space=sflag, size = 0x4, scoped, tag = 'scoped memory for tpu_custom_call.1']
    #allocation7 [shape = 'u8[131072]{0}', space=vmem, size = 0x20000, scoped, tag = 'input window, operand 2, single buffered']
    #allocation8 [shape = 'u8[131072]{0}', space=vmem, size = 0x20000, scoped, tag = 'input window, operand 4, single buffered']
    #allocation9 [shape = 's32[1]{0}', space=sflag, size = 0x4, scoped, tag = 'scoped memory for tpu_custom_call.1']
    #allocation10 [shape = 'u8[8192]{0}', space=vmem, size = 0x2000, scoped, tag = 'input window, operand 5, single buffered']
    #allocation11 [shape = 'u8[8192]{0}', space=vmem, size = 0x2000, scoped, tag = 'output window, operand 0, single buffered']
    %11 = vsyncpa [#allocation3], 0
    %12 = vsyncpa [#allocation6], 0
    %13 = vsyncpa [#allocation9], 0
    %14 = vsyncpa [#allocation4], 0
    // Predicated region
    $region2: #{tpu_custom_call.1} parent=1 // pred_check
      _
    $region3: #{tpu_custom_call.1} parent=1 // pred_check_branch
      %16 = sbr.rel (0) target = $region5
    $region4: #{tpu_custom_call.1} parent=1 // pred_region
      %s18 = ssub.s32 256, 256
      %19 = vsyncadd [#allocation3], %s18
      %s20 = sshll.u32 [#allocation2], 4
      %s21 = int_to_ptr.vmem [resolvable:$true] %s20
      %26 = dma.hbm_to_vmem [thread:$0]  %s0, 256, %s21, [#allocation3], 128, 128, 8
    $region5: #{tpu_custom_call.1} parent=1 // pred_fallthru
      _
    // Predicated region
    $region6: #{tpu_custom_call.1} parent=1 // pred_check
      _
    $region7: #{tpu_custom_call.1} parent=1 // pred_check_branch
      %28 = sbr.rel (0) target = $region9
    $region8: #{tpu_custom_call.1} parent=1 // pred_region
      %s30 = ssub.s32 64, 64
      %31 = vsyncadd [#allocation6], %s30
      %s33 = sshll.u32 [#allocation5], 4
      %s34 = int_to_ptr.vmem [resolvable:$true] %s33
      %36 = dma.hbm_to_vmem [thread:$0]  %s1, 64, %s34, [#allocation6]
    $region9: #{tpu_custom_call.1} parent=1 // pred_fallthru
      _
    // Predicated region
    $region10: #{tpu_custom_call.1} parent=1 // pred_check
      _
    $region11: #{tpu_custom_call.1} parent=1 // pred_check_branch
      %38 = sbr.rel (0) target = $region13
    $region12: #{tpu_custom_call.1} parent=1 // pred_region
      %s40 = ssub.s32 4096, 4096
      %41 = vsyncadd [#allocation6], %s40
      %s42 = sshll.u32 [#allocation7], 4
      %s43 = int_to_ptr.vmem [resolvable:$true] %s42
      %48 = dma.hbm_to_vmem [thread:$0]  %s2, 4096, %s43, [#allocation6], 256, 256, 16
    $region13: #{tpu_custom_call.1} parent=1 // pred_fallthru
      _
    // Predicated region
    $region14: #{tpu_custom_call.1} parent=1 // pred_check
      _
    $region15: #{tpu_custom_call.1} parent=1 // pred_check_branch
      %50 = sbr.rel (0) target = $region17
    $region16: #{tpu_custom_call.1} parent=1 // pred_region
      _
    $region17: #{tpu_custom_call.1} parent=1 // pred_fallthru
      _
    // Predicated region
    $region18: #{tpu_custom_call.1} parent=1 // pred_check
      _
    $region19: #{tpu_custom_call.1} parent=1 // pred_check_branch
      %52 = sbr.rel (0) target = $region21
    $region20: #{tpu_custom_call.1} parent=1 // pred_region
      %s54 = ssub.s32 4096, 4096
      %55 = vsyncadd [#allocation9], %s54
      %s56 = sshll.u32 [#allocation8], 4
      %s57 = int_to_ptr.vmem [resolvable:$true] %s56
      %62 = dma.hbm_to_vmem [thread:$0]  %s4, 4096, %s57, [#allocation9], 64, 64, 4
    $region21: #{tpu_custom_call.1} parent=1 // pred_fallthru
      _
    // Predicated region
    $region22: #{tpu_custom_call.1} parent=1 // pred_check
      _
    $region23: #{tpu_custom_call.1} parent=1 // pred_check_branch
      %64 = sbr.rel (0) target = $region25
    $region24: #{tpu_custom_call.1} parent=1 // pred_region
      %s66 = ssub.s32 256, 256
      %67 = vsyncadd [#allocation9], %s66
      %s68 = sshll.u32 [#allocation10], 4
      %s69 = int_to_ptr.vmem [resolvable:$true] %s68
      %74 = dma.hbm_to_vmem [thread:$0]  %s5, 256, %s69, [#allocation9], 128, 128, 8
    $region25: #{tpu_custom_call.1} parent=1 // pred_fallthru
      _
    // Predicated region
    $region26: #{tpu_custom_call.1} parent=1 // pred_check
      _
    $region27: #{tpu_custom_call.1} parent=1 // pred_check_branch
      %76 = sbr.rel (0) target = $region29
    $region28: #{tpu_custom_call.1} parent=1 // pred_region
      %77 = dma.done [#allocation3], 256
    $region29: #{tpu_custom_call.1} parent=1 // pred_fallthru
      _
    // Predicated region
    $region30: #{tpu_custom_call.1} parent=1 // pred_check
      _
    $region31: #{tpu_custom_call.1} parent=1 // pred_check_branch
      %79 = sbr.rel (0) target = $region33
    $region32: #{tpu_custom_call.1} parent=1 // pred_region
      %80 = dma.done [#allocation6], 64
    $region33: #{tpu_custom_call.1} parent=1 // pred_fallthru
      _
    // Predicated region
    $region34: #{tpu_custom_call.1} parent=1 // pred_check
      _
    $region35: #{tpu_custom_call.1} parent=1 // pred_check_branch
      %82 = sbr.rel (0) target = $region37
    $region36: #{tpu_custom_call.1} parent=1 // pred_region
      %83 = dma.done [#allocation6], 4096
    $region37: #{tpu_custom_call.1} parent=1 // pred_fallthru
      _
    // Predicated region
    $region38: #{tpu_custom_call.1} parent=1 // pred_check
      _
    $region39: #{tpu_custom_call.1} parent=1 // pred_check_branch
      %85 = sbr.rel (0) target = $region41
    $region40: #{tpu_custom_call.1} parent=1 // pred_region
      %86 = dma.done [#allocation9], 4096
    $region41: #{tpu_custom_call.1} parent=1 // pred_fallthru
      _
    // Predicated region
    $region42: #{tpu_custom_call.1} parent=1 // pred_check
      _
    $region43: #{tpu_custom_call.1} parent=1 // pred_check_branch
      %88 = sbr.rel (0) target = $region45
    $region44: #{tpu_custom_call.1} parent=1 // pred_region
      %89 = dma.done [#allocation9], 256
    $region45: #{tpu_custom_call.1} parent=1 // pred_fallthru
      _
    %v91 = vld [vmem:[#allocation2] sm:$0xff]
    %v92 = vld [vmem:[#allocation2 + $0x8] sm:$0xff]
    %v93 = vld [vmem:[#allocation5] sm:$0x7]
    %94 = vadd.xlane.f32.xlu0 %v91
    %v95 = vpop.xlane.xlu0 %94
    %96 = vadd.xlane.f32.xlu0 %v92
    %v97 = vpop.xlane.xlu0 %96
    %v98 = vmul.f32 %v91, %v91
    %v99 = vmul.f32 %v92, %v92
    %100 = vadd.xlane.f32.xlu0 %v98
    %v101 = vpop.xlane.xlu0 %100
    %102 = vadd.xlane.f32.xlu0 %v99
    %v103 = vpop.xlane.xlu0 %102
    %v104 = vmul.f32 %v95, 0.0078125
    %v105 = vmul.f32 %v97, 0.0078125
    %v106 = vmul.f32 %v101, 0.0078125
    %v107 = vmul.f32 %v103, 0.0078125
    %v108 = vmul.f32 %v104, %v104
    %v109 = vmul.f32 %v105, %v105
    %v110 = vsub.f32 %v106, %v108
    %v111 = vsub.f32 %v107, %v109
    %v112 = vmax.f32 %v110, 0.0
    %v113 = vmax.f32 %v111, 0.0
    %v114 = vsub.f32 %v91, %v104
    %v115 = vsub.f32 %v92, %v105
    %v116 = vadd.f32 %v112, 1e-05
    %v117 = vadd.f32 %v113, 1e-05
    %v118 = vrsqrt.pop %v116
    %v119 = vrsqrt.pop %v117
    %v120 = vmul.f32 %v114, %v118
    %v121 = vmul.f32 %v115, %v119
    %v122 = vlaneseq
    %v123 = vshrl.u32 %v122, 7
    %v124 = vsub.s32 0, %v123
    %v125 = vrot.slane %v93, %v124
    %v126 = vmul.f32 %v120, %v125
    %v127 = vmul.f32 %v121, %v125
    %v128 = vlaneseq
    %v129 = vshrl.u32 %v128, 7
    %v130 = vsub.s32 1, %v129
    %v131 = vrot.slane %v93, %v130
    %v132 = vadd.f32 %v126, %v131
    %v133 = vadd.f32 %v127, %v131
    %v134 = vpack.c.bf16 %v133, %v132
    %v135 = vld [vmem:[#allocation7] sm:$0xff]
    %v136 = vld [vmem:[#allocation7 + $0x8] sm:$0xff]
    %v137 = vld [vmem:[#allocation7 + $0x10] sm:$0xff]
    %v138 = vld [vmem:[#allocation7 + $0x18] sm:$0xff]
    %v139 = vld [vmem:[#allocation7 + $0x20] sm:$0xff]
    %v140 = vld [vmem:[#allocation7 + $0x28] sm:$0xff]
    %v141 = vld [vmem:[#allocation7 + $0x30] sm:$0xff]
    %v142 = vld [vmem:[#allocation7 + $0x38] sm:$0xff]
    %v143 = vld [vmem:[#allocation7 + $0x40] sm:$0xff]
    %v144 = vld [vmem:[#allocation7 + $0x48] sm:$0xff]
    %v145 = vld [vmem:[#allocation7 + $0x50] sm:$0xff]
    %v146 = vld [vmem:[#allocation7 + $0x58] sm:$0xff]
    %v147 = vld [vmem:[#allocation7 + $0x60] sm:$0xff]
    %v148 = vld [vmem:[#allocation7 + $0x68] sm:$0xff]
    %v149 = vld [vmem:[#allocation7 + $0x70] sm:$0xff]
    %v150 = vld [vmem:[#allocation7 + $0x78] sm:$0xff]
    %v151 = vld [vmem:[#allocation7 + $0x80] sm:$0xff]
    %v152 = vld [vmem:[#allocation7 + $0x88] sm:$0xff]
    %v153 = vld [vmem:[#allocation7 + $0x90] sm:$0xff]
    %v154 = vld [vmem:[#allocation7 + $0x98] sm:$0xff]
    %v155 = vld [vmem:[#allocation7 + $0xa0] sm:$0xff]
    %v156 = vld [vmem:[#allocation7 + $0xa8] sm:$0xff]
    %v157 = vld [vmem:[#allocation7 + $0xb0] sm:$0xff]
    %v158 = vld [vmem:[#allocation7 + $0xb8] sm:$0xff]
    %v159 = vld [vmem:[#allocation7 + $0xc0] sm:$0xff]
    %v160 = vld [vmem:[#allocation7 + $0xc8] sm:$0xff]
    %v161 = vld [vmem:[#allocation7 + $0xd0] sm:$0xff]
    %v162 = vld [vmem:[#allocation7 + $0xd8] sm:$0xff]
    %v163 = vld [vmem:[#allocation7 + $0xe0] sm:$0xff]
    %v164 = vld [vmem:[#allocation7 + $0xe8] sm:$0xff]
    %v165 = vld [vmem:[#allocation7 + $0xf0] sm:$0xff]
    %v166 = vld [vmem:[#allocation7 + $0xf8] sm:$0xff]
    %v167 = vld [vmem:[%s3] sm:$0xf]
    %v169 = vlaneseq
    %v170 = vshrl.u32 %v169, 7
    %v171 = vsub.s32 0, %v170
    %v172 = vrot.slane %v167, %v171
    %v173 = vlaneseq
    %v174 = vshrl.u32 %v173, 7
    %v175 = vsub.s32 1, %v174
    %v176 = vrot.slane %v167, %v175
    %v177 = vlaneseq
    %v178 = vshrl.u32 %v177, 7
    %v179 = vsub.s32 2, %v178
    %v180 = vrot.slane %v167, %v179
    %v181 = vlaneseq
    %v182 = vshrl.u32 %v181, 7
    %v183 = vsub.s32 3, %v182
    %v184 = vrot.slane %v167, %v183
    %v221 = vunpack.c.l.b16 %v135
    %v222 = vunpack.c.h.b16 %v135
    %v223 = vunpack.c.l.b16 %v136
    %v224 = vunpack.c.h.b16 %v136
    %v225 = vunpack.c.l.b16 %v137
    %v226 = vunpack.c.h.b16 %v137
    %v227 = vunpack.c.l.b16 %v138
    %v228 = vunpack.c.h.b16 %v138
    %v229 = vunpack.c.l.b16 %v139
    %v230 = vunpack.c.h.b16 %v139
    %v231 = vunpack.c.l.b16 %v140
    %v232 = vunpack.c.h.b16 %v140
    %v233 = vunpack.c.l.b16 %v141
    %v234 = vunpack.c.h.b16 %v141
    %v235 = vunpack.c.l.b16 %v142
    %v236 = vunpack.c.h.b16 %v142
    %v237 = vunpack.c.l.b16 %v143
    %v238 = vunpack.c.h.b16 %v143
    %v239 = vunpack.c.l.b16 %v144
    %v240 = vunpack.c.h.b16 %v144
    %v241 = vunpack.c.l.b16 %v145
    %v242 = vunpack.c.h.b16 %v145
    %v243 = vunpack.c.l.b16 %v146
    %v244 = vunpack.c.h.b16 %v146
    %v245 = vunpack.c.l.b16 %v147
    %v246 = vunpack.c.h.b16 %v147
    %v247 = vunpack.c.l.b16 %v148
    %v248 = vunpack.c.h.b16 %v148
    %v249 = vunpack.c.l.b16 %v149
    %v250 = vunpack.c.h.b16 %v149
    %v251 = vunpack.c.l.b16 %v150
    %v252 = vunpack.c.h.b16 %v150
    %v253 = vunpack.c.l.b16 %v151
    %v254 = vunpack.c.h.b16 %v151
    %v255 = vunpack.c.l.b16 %v152
    %v256 = vunpack.c.h.b16 %v152
    %v257 = vunpack.c.l.b16 %v153
    %v258 = vunpack.c.h.b16 %v153
    %v259 = vunpack.c.l.b16 %v154
    %v260 = vunpack.c.h.b16 %v154
    %v261 = vunpack.c.l.b16 %v155
    %v262 = vunpack.c.h.b16 %v155
    %v263 = vunpack.c.l.b16 %v156
    %v264 = vunpack.c.h.b16 %v156
    %v265 = vunpack.c.l.b16 %v157
    %v266 = vunpack.c.h.b16 %v157
    %v267 = vunpack.c.l.b16 %v158
    %v268 = vunpack.c.h.b16 %v158
    %v269 = vunpack.c.l.b16 %v159
    %v270 = vunpack.c.h.b16 %v159
    %v271 = vunpack.c.l.b16 %v160
    %v272 = vunpack.c.h.b16 %v160
    %v273 = vunpack.c.l.b16 %v161
    %v274 = vunpack.c.h.b16 %v161
    %v275 = vunpack.c.l.b16 %v162
    %v276 = vunpack.c.h.b16 %v162
    %v277 = vunpack.c.l.b16 %v163
    %v278 = vunpack.c.h.b16 %v163
    %v279 = vunpack.c.l.b16 %v164
    %v280 = vunpack.c.h.b16 %v164
    %v281 = vunpack.c.l.b16 %v165
    %v282 = vunpack.c.h.b16 %v165
    %v283 = vunpack.c.l.b16 %v166
    %v284 = vunpack.c.h.b16 %v166
    %v285 = vpack.c.b16 %v225, %v221
    %v286 = vpack.c.b16 %v226, %v222
    %v287 = vpack.c.b16 %v227, %v223
    %v288 = vpack.c.b16 %v228, %v224
    %v289 = vpack.c.b16 %v233, %v229
    %v290 = vpack.c.b16 %v234, %v230
    %v291 = vpack.c.b16 %v235, %v231
    %v292 = vpack.c.b16 %v236, %v232
    %v293 = vpack.c.b16 %v241, %v237
    %v294 = vpack.c.b16 %v242, %v238
    %v295 = vpack.c.b16 %v243, %v239
    %v296 = vpack.c.b16 %v244, %v240
    %v297 = vpack.c.b16 %v249, %v245
    %v298 = vpack.c.b16 %v250, %v246
    %v299 = vpack.c.b16 %v251, %v247
    %v300 = vpack.c.b16 %v252, %v248
    %v301 = vpack.c.b16 %v257, %v253
    %v302 = vpack.c.b16 %v258, %v254
    %v303 = vpack.c.b16 %v259, %v255
    %v304 = vpack.c.b16 %v260, %v256
    %v305 = vpack.c.b16 %v265, %v261
    %v306 = vpack.c.b16 %v266, %v262
    %v307 = vpack.c.b16 %v267, %v263
    %v308 = vpack.c.b16 %v268, %v264
    %v309 = vpack.c.b16 %v273, %v269
    %v310 = vpack.c.b16 %v274, %v270
    %v311 = vpack.c.b16 %v275, %v271
    %v312 = vpack.c.b16 %v276, %v272
    %v313 = vpack.c.b16 %v281, %v277
    %v314 = vpack.c.b16 %v282, %v278
    %v315 = vpack.c.b16 %v283, %v279
    %v316 = vpack.c.b16 %v284, %v280
    %349 = vmatprep.subr.bf16.mxu0 %v314
    %350 = vmatpush1.bf16.msra.mxu0 %v313
    %351 = vmatprep.subr.bf16.mxu0 %v310
    %352 = vmatpush1.bf16.msra.mxu0 %v309
    %353 = vmatprep.subr.bf16.mxu0 %v306
    %354 = vmatpush1.bf16.msra.mxu0 %v305
    %355 = vmatprep.subr.bf16.mxu0 %v302
    %356 = vmatpush1.bf16.msra.mxu0 %v301
    %357 = vmatprep.subr.bf16.mxu0 %v298
    %358 = vmatpush1.bf16.msra.mxu0 %v297
    %359 = vmatprep.subr.bf16.mxu0 %v294
    %360 = vmatpush1.bf16.msra.mxu0 %v293
    %361 = vmatprep.subr.bf16.mxu0 %v290
    %362 = vmatpush1.bf16.msra.mxu0 %v289
    %363 = vmatprep.subr.bf16.mxu0 %v286
    %364 = vmatpush1.bf16.msra.mxu0 %v285
    %365 = vmatprep.subr.bf16.mxu0 0
    %366 = vmatpush2.bf16.msra.mxu0 0
    %367 = vmatprep.subr.bf16.mxu0 0
    %368 = vmatpush2.bf16.msra.mxu0 0
    %369 = vmatprep.subr.bf16.mxu0 0
    %370 = vmatpush2.bf16.msra.mxu0 0
    %371 = vmatprep.subr.bf16.mxu0 0
    %372 = vmatpush2.bf16.msra.mxu0 0
    %373 = vmatprep.subr.bf16.mxu0 0
    %374 = vmatpush2.bf16.msra.mxu0 0
    %375 = vmatprep.subr.bf16.mxu0 0
    %376 = vmatpush2.bf16.msra.mxu0 0
    %377 = vmatprep.subr.bf16.mxu0 0
    %378 = vmatpush2.bf16.msra.mxu0 0
    %379 = vmatprep.subr.bf16.mxu0 0
    %380 = vmatpush2.bf16.msra.mxu0 0
    %381 = vmatprep.mubr.bf16.mxu0 0
    %382 = vmatmul.mubr.bf16.gmra.mxu0 %v134
    %v383 = vpop.f32.mrf.mxu0
    %v384 = vadd.f32 %v172, %v383
    %v385 = vpop.f32.mrf.mxu0
    %v386 = vadd.f32 %v176, %v385
    %v387 = vpop.f32.mrf.mxu0
    %v388 = vadd.f32 %v172, %v387
    %v389 = vpop.f32.mrf.mxu0
    %v390 = vadd.f32 %v176, %v389
    %391 = vdwg.mxu0
    %392 = vmatprep.subr.bf16.mxu0 %v316
    %393 = vmatpush1.bf16.msra.mxu0 %v315
    %394 = vmatprep.subr.bf16.mxu0 %v312
    %395 = vmatpush1.bf16.msra.mxu0 %v311
    %396 = vmatprep.subr.bf16.mxu0 %v308
    %397 = vmatpush1.bf16.msra.mxu0 %v307
    %398 = vmatprep.subr.bf16.mxu0 %v304
    %399 = vmatpush1.bf16.msra.mxu0 %v303
    %400 = vmatprep.subr.bf16.mxu0 %v300
    %401 = vmatpush1.bf16.msra.mxu0 %v299
    %402 = vmatprep.subr.bf16.mxu0 %v296
    %403 = vmatpush1.bf16.msra.mxu0 %v295
    %404 = vmatprep.subr.bf16.mxu0 %v292
    %405 = vmatpush1.bf16.msra.mxu0 %v291
    %406 = vmatprep.subr.bf16.mxu0 %v288
    %407 = vmatpush1.bf16.msra.mxu0 %v287
    %408 = vmatprep.subr.bf16.mxu0 0
    %409 = vmatpush2.bf16.msra.mxu0 0
    %410 = vmatprep.subr.bf16.mxu0 0
    %411 = vmatpush2.bf16.msra.mxu0 0
    %412 = vmatprep.subr.bf16.mxu0 0
    %413 = vmatpush2.bf16.msra.mxu0 0
    %414 = vmatprep.subr.bf16.mxu0 0
    %415 = vmatpush2.bf16.msra.mxu0 0
    %416 = vmatprep.subr.bf16.mxu0 0
    %417 = vmatpush2.bf16.msra.mxu0 0
    %418 = vmatprep.subr.bf16.mxu0 0
    %419 = vmatpush2.bf16.msra.mxu0 0
    %420 = vmatprep.subr.bf16.mxu0 0
    %421 = vmatpush2.bf16.msra.mxu0 0
    %422 = vmatprep.subr.bf16.mxu0 0
    %423 = vmatpush2.bf16.msra.mxu0 0
    %424 = vmatprep.mubr.bf16.mxu0 0
    %425 = vmatmul.mubr.bf16.gmra.mxu0 %v134
    %v426 = vpop.f32.mrf.mxu0
    %v427 = vadd.f32 %v180, %v426
    %v428 = vpop.f32.mrf.mxu0
    %v429 = vadd.f32 %v184, %v428
    %v430 = vpop.f32.mrf.mxu0
    %v431 = vadd.f32 %v180, %v430
    %v432 = vpop.f32.mrf.mxu0
    %v433 = vadd.f32 %v184, %v432
    %434 = vdwg.mxu0
    %v435 = vmul.f32 %v384, 1.702
    %v436 = vmul.f32 %v386, 1.702
    %v437 = vmul.f32 %v427, 1.702
    %v438 = vmul.f32 %v429, 1.702
    %v439 = vmul.f32 %v388, 1.702
    %v440 = vmul.f32 %v390, 1.702
    %v441 = vmul.f32 %v431, 1.702
    %v442 = vmul.f32 %v433, 1.702
    %v443 = vxor.u32 %v435, 2147483648
    %v444 = vxor.u32 %v436, 2147483648
    %v445 = vxor.u32 %v437, 2147483648
    %v446 = vxor.u32 %v438, 2147483648
    %v447 = vxor.u32 %v439, 2147483648
    %v448 = vxor.u32 %v440, 2147483648
    %v449 = vxor.u32 %v441, 2147483648
    %v450 = vxor.u32 %v442, 2147483648
    %v451 = vmul.f32 %v443, 1.442695
    %v452 = vpow.pop %v451
    %v453 = vmul.f32 %v444, 1.442695
    %v454 = vpow.pop %v453
    %v455 = vmul.f32 %v445, 1.442695
    %v456 = vpow.pop %v455
    %v457 = vmul.f32 %v446, 1.442695
    %v458 = vpow.pop %v457
    %v459 = vmul.f32 %v447, 1.442695
    %v460 = vpow.pop %v459
    %v461 = vmul.f32 %v448, 1.442695
    %v462 = vpow.pop %v461
    %v463 = vmul.f32 %v449, 1.442695
    %v464 = vpow.pop %v463
    %v465 = vmul.f32 %v450, 1.442695
    %v466 = vpow.pop %v465
    %v467 = vadd.f32 %v452, 1.0
    %v468 = vadd.f32 %v454, 1.0
    %v469 = vadd.f32 %v456, 1.0
    %v470 = vadd.f32 %v458, 1.0
    %v471 = vadd.f32 %v460, 1.0
    %v472 = vadd.f32 %v462, 1.0
    %v473 = vadd.f32 %v464, 1.0
    %v474 = vadd.f32 %v466, 1.0
    %v475 = vrcp.pop %v467
    %v476 = vmul.f32 1.0, %v475
    %v477 = vrcp.pop %v468
    %v478 = vmul.f32 1.0, %v477
    %v479 = vrcp.pop %v469
    %v480 = vmul.f32 1.0, %v479
    %v481 = vrcp.pop %v470
    %v482 = vmul.f32 1.0, %v481
    %v483 = vrcp.pop %v471
    %v484 = vmul.f32 1.0, %v483
    %v485 = vrcp.pop %v472
    %v486 = vmul.f32 1.0, %v485
    %v487 = vrcp.pop %v473
    %v488 = vmul.f32 1.0, %v487
    %v489 = vrcp.pop %v474
    %v490 = vmul.f32 1.0, %v489
    %v491 = vmul.f32 %v384, %v476
    %v492 = vmul.f32 %v386, %v478
    %v493 = vmul.f32 %v427, %v480
    %v494 = vmul.f32 %v429, %v482
    %v495 = vmul.f32 %v388, %v484
    %v496 = vmul.f32 %v390, %v486
    %v497 = vmul.f32 %v431, %v488
    %v498 = vmul.f32 %v433, %v490
    %v499 = vpack.c.bf16 %v495, %v491
    %v500 = vpack.c.bf16 %v496, %v492
    %v501 = vpack.c.bf16 %v497, %v493
    %v502 = vpack.c.bf16 %v498, %v494
    %v503 = vld [vmem:[#allocation8] sm:$0xf]
    %v504 = vld [vmem:[#allocation8 + $0x4] sm:$0xf]
    %v505 = vld [vmem:[#allocation8 + $0x8] sm:$0xf]
    %v506 = vld [vmem:[#allocation8 + $0xc] sm:$0xf]
    %v507 = vld [vmem:[#allocation8 + $0x10] sm:$0xf]
    %v508 = vld [vmem:[#allocation8 + $0x14] sm:$0xf]
    %v509 = vld [vmem:[#allocation8 + $0x18] sm:$0xf]
    %v510 = vld [vmem:[#allocation8 + $0x1c] sm:$0xf]
    %v511 = vld [vmem:[#allocation8 + $0x20] sm:$0xf]
    %v512 = vld [vmem:[#allocation8 + $0x24] sm:$0xf]
    %v513 = vld [vmem:[#allocation8 + $0x28] sm:$0xf]
    %v514 = vld [vmem:[#allocation8 + $0x2c] sm:$0xf]
    %v515 = vld [vmem:[#allocation8 + $0x30] sm:$0xf]
    %v516 = vld [vmem:[#allocation8 + $0x34] sm:$0xf]
    %v517 = vld [vmem:[#allocation8 + $0x38] sm:$0xf]
    %v518 = vld [vmem:[#allocation8 + $0x3c] sm:$0xf]
    %v519 = vld [vmem:[#allocation8 + $0x40] sm:$0xf]
    %v520 = vld [vmem:[#allocation8 + $0x44] sm:$0xf]
    %v521 = vld [vmem:[#allocation8 + $0x48] sm:$0xf]
    %v522 = vld [vmem:[#allocation8 + $0x4c] sm:$0xf]
    %v523 = vld [vmem:[#allocation8 + $0x50] sm:$0xf]
    %v524 = vld [vmem:[#allocation8 + $0x54] sm:$0xf]
    %v525 = vld [vmem:[#allocation8 + $0x58] sm:$0xf]
    %v526 = vld [vmem:[#allocation8 + $0x5c] sm:$0xf]
    %v527 = vld [vmem:[#allocation8 + $0x60] sm:$0xf]
    %v528 = vld [vmem:[#allocation8 + $0x64] sm:$0xf]
    %v529 = vld [vmem:[#allocation8 + $0x68] sm:$0xf]
    %v530 = vld [vmem:[#allocation8 + $0x6c] sm:$0xf]
    %v531 = vld [vmem:[#allocation8 + $0x70] sm:$0xf]
    %v532 = vld [vmem:[#allocation8 + $0x74] sm:$0xf]
    %v533 = vld [vmem:[#allocation8 + $0x78] sm:$0xf]
    %v534 = vld [vmem:[#allocation8 + $0x7c] sm:$0xf]
    %v535 = vld [vmem:[#allocation8 + $0x80] sm:$0xf]
    %v536 = vld [vmem:[#allocation8 + $0x84] sm:$0xf]
    %v537 = vld [vmem:[#allocation8 + $0x88] sm:$0xf]
    %v538 = vld [vmem:[#allocation8 + $0x8c] sm:$0xf]
    %v539 = vld [vmem:[#allocation8 + $0x90] sm:$0xf]
    %v540 = vld [vmem:[#allocation8 + $0x94] sm:$0xf]
    %v541 = vld [vmem:[#allocation8 + $0x98] sm:$0xf]
    %v542 = vld [vmem:[#allocation8 + $0x9c] sm:$0xf]
    %v543 = vld [vmem:[#allocation8 + $0xa0] sm:$0xf]
    %v544 = vld [vmem:[#allocation8 + $0xa4] sm:$0xf]
    %v545 = vld [vmem:[#allocation8 + $0xa8] sm:$0xf]
    %v546 = vld [vmem:[#allocation8 + $0xac] sm:$0xf]
    %v547 = vld [vmem:[#allocation8 + $0xb0] sm:$0xf]
    %v548 = vld [vmem:[#allocation8 + $0xb4] sm:$0xf]
    %v549 = vld [vmem:[#allocation8 + $0xb8] sm:$0xf]
    %v550 = vld [vmem:[#allocation8 + $0xbc] sm:$0xf]
    %v551 = vld [vmem:[#allocation8 + $0xc0] sm:$0xf]
    %v552 = vld [vmem:[#allocation8 + $0xc4] sm:$0xf]
    %v553 = vld [vmem:[#allocation8 + $0xc8] sm:$0xf]
    %v554 = vld [vmem:[#allocation8 + $0xcc] sm:$0xf]
    %v555 = vld [vmem:[#allocation8 + $0xd0] sm:$0xf]
    %v556 = vld [vmem:[#allocation8 + $0xd4] sm:$0xf]
    %v557 = vld [vmem:[#allocation8 + $0xd8] sm:$0xf]
    %v558 = vld [vmem:[#allocation8 + $0xdc] sm:$0xf]
    %v559 = vld [vmem:[#allocation8 + $0xe0] sm:$0xf]
    %v560 = vld [vmem:[#allocation8 + $0xe4] sm:$0xf]
    %v561 = vld [vmem:[#allocation8 + $0xe8] sm:$0xf]
    %v562 = vld [vmem:[#allocation8 + $0xec] sm:$0xf]
    %v563 = vld [vmem:[#allocation8 + $0xf0] sm:$0xf]
    %v564 = vld [vmem:[#allocation8 + $0xf4] sm:$0xf]
    %v565 = vld [vmem:[#allocation8 + $0xf8] sm:$0xf]
    %v566 = vld [vmem:[#allocation8 + $0xfc] sm:$0xf]
    %v631 = vunpack.c.l.b16 %v503
    %v632 = vunpack.c.l.b16 %v504
    %v633 = vunpack.c.l.b16 %v505
    %v634 = vunpack.c.l.b16 %v506
    %v635 = vunpack.c.l.b16 %v507
    %v636 = vunpack.c.l.b16 %v508
    %v637 = vunpack.c.l.b16 %v509
    %v638 = vunpack.c.l.b16 %v510
    %v639 = vunpack.c.l.b16 %v511
    %v640 = vunpack.c.l.b16 %v512
    %v641 = vunpack.c.l.b16 %v513
    %v642 = vunpack.c.l.b16 %v514
    %v643 = vunpack.c.l.b16 %v515
    %v644 = vunpack.c.l.b16 %v516
    %v645 = vunpack.c.l.b16 %v517
    %v646 = vunpack.c.l.b16 %v518
    %v647 = vunpack.c.l.b16 %v519
    %v648 = vunpack.c.l.b16 %v520
    %v649 = vunpack.c.l.b16 %v521
    %v650 = vunpack.c.l.b16 %v522
    %v651 = vunpack.c.l.b16 %v523
    %v652 = vunpack.c.l.b16 %v524
    %v653 = vunpack.c.l.b16 %v525
    %v654 = vunpack.c.l.b16 %v526
    %v655 = vunpack.c.l.b16 %v527
    %v656 = vunpack.c.l.b16 %v528
    %v657 = vunpack.c.l.b16 %v529
    %v658 = vunpack.c.l.b16 %v530
    %v659 = vunpack.c.l.b16 %v531
    %v660 = vunpack.c.l.b16 %v532
    %v661 = vunpack.c.l.b16 %v533
    %v662 = vunpack.c.l.b16 %v534
    %v663 = vunpack.c.l.b16 %v535
    %v664 = vunpack.c.l.b16 %v536
    %v665 = vunpack.c.l.b16 %v537
    %v666 = vunpack.c.l.b16 %v538
    %v667 = vunpack.c.l.b16 %v539
    %v668 = vunpack.c.l.b16 %v540
    %v669 = vunpack.c.l.b16 %v541
    %v670 = vunpack.c.l.b16 %v542
    %v671 = vunpack.c.l.b16 %v543
    %v672 = vunpack.c.l.b16 %v544
    %v673 = vunpack.c.l.b16 %v545
    %v674 = vunpack.c.l.b16 %v546
    %v675 = vunpack.c.l.b16 %v547
    %v676 = vunpack.c.l.b16 %v548
    %v677 = vunpack.c.l.b16 %v549
    %v678 = vunpack.c.l.b16 %v550
    %v679 = vunpack.c.l.b16 %v551
    %v680 = vunpack.c.l.b16 %v552
    %v681 = vunpack.c.l.b16 %v553
    %v682 = vunpack.c.l.b16 %v554
    %v683 = vunpack.c.l.b16 %v555
    %v684 = vunpack.c.l.b16 %v556
    %v685 = vunpack.c.l.b16 %v557
    %v686 = vunpack.c.l.b16 %v558
    %v687 = vunpack.c.l.b16 %v559
    %v688 = vunpack.c.l.b16 %v560
    %v689 = vunpack.c.l.b16 %v561
    %v690 = vunpack.c.l.b16 %v562
    %v691 = vunpack.c.l.b16 %v563
    %v692 = vunpack.c.l.b16 %v564
    %v693 = vunpack.c.l.b16 %v565
    %v694 = vunpack.c.l.b16 %v566
    %v695 = vpack.c.b16 %v632, %v631
    %v696 = vpack.c.b16 %v634, %v633
    %v697 = vpack.c.b16 %v636, %v635
    %v698 = vpack.c.b16 %v638, %v637
    %v699 = vpack.c.b16 %v640, %v639
    %v700 = vpack.c.b16 %v642, %v641
    %v701 = vpack.c.b16 %v644, %v643
    %v702 = vpack.c.b16 %v646, %v645
    %v703 = vpack.c.b16 %v648, %v647
    %v704 = vpack.c.b16 %v650, %v649
    %v705 = vpack.c.b16 %v652, %v651
    %v706 = vpack.c.b16 %v654, %v653
    %v707 = vpack.c.b16 %v656, %v655
    %v708 = vpack.c.b16 %v658, %v657
    %v709 = vpack.c.b16 %v660, %v659
    %v710 = vpack.c.b16 %v662, %v661
    %v711 = vpack.c.b16 %v664, %v663
    %v712 = vpack.c.b16 %v666, %v665
    %v713 = vpack.c.b16 %v668, %v667
    %v714 = vpack.c.b16 %v670, %v669
    %v715 = vpack.c.b16 %v672, %v671
    %v716 = vpack.c.b16 %v674, %v673
    %v717 = vpack.c.b16 %v676, %v675
    %v718 = vpack.c.b16 %v678, %v677
    %v719 = vpack.c.b16 %v680, %v679
    %v720 = vpack.c.b16 %v682, %v681
    %v721 = vpack.c.b16 %v684, %v683
    %v722 = vpack.c.b16 %v686, %v685
    %v723 = vpack.c.b16 %v688, %v687
    %v724 = vpack.c.b16 %v690, %v689
    %v725 = vpack.c.b16 %v692, %v691
    %v726 = vpack.c.b16 %v694, %v693
    %759 = vmatprep.subr.bf16.mxu0 0
    %760 = vmatpush1.bf16.msra.mxu0 %v702
    %761 = vmatprep.subr.bf16.mxu0 0
    %762 = vmatpush1.bf16.msra.mxu0 %v701
    %763 = vmatprep.subr.bf16.mxu0 0
    %764 = vmatpush1.bf16.msra.mxu0 %v700
    %765 = vmatprep.subr.bf16.mxu0 0
    %766 = vmatpush1.bf16.msra.mxu0 %v699
    %767 = vmatprep.subr.bf16.mxu0 0
    %768 = vmatpush1.bf16.msra.mxu0 %v698
    %769 = vmatprep.subr.bf16.mxu0 0
    %770 = vmatpush1.bf16.msra.mxu0 %v697
    %771 = vmatprep.subr.bf16.mxu0 0
    %772 = vmatpush1.bf16.msra.mxu0 %v696
    %773 = vmatprep.subr.bf16.mxu0 0
    %774 = vmatpush1.bf16.msra.mxu0 %v695
    %775 = vmatprep.subr.bf16.mxu0 0
    %776 = vmatpush2.bf16.msra.mxu0 %v710
    %777 = vmatprep.subr.bf16.mxu0 0
    %778 = vmatpush2.bf16.msra.mxu0 %v709
    %779 = vmatprep.subr.bf16.mxu0 0
    %780 = vmatpush2.bf16.msra.mxu0 %v708
    %781 = vmatprep.subr.bf16.mxu0 0
    %782 = vmatpush2.bf16.msra.mxu0 %v707
    %783 = vmatprep.subr.bf16.mxu0 0
    %784 = vmatpush2.bf16.msra.mxu0 %v706
    %785 = vmatprep.subr.bf16.mxu0 0
    %786 = vmatpush2.bf16.msra.mxu0 %v705
    %787 = vmatprep.subr.bf16.mxu0 0
    %788 = vmatpush2.bf16.msra.mxu0 %v704
    %789 = vmatprep.subr.bf16.mxu0 0
    %790 = vmatpush2.bf16.msra.mxu0 %v703
    %791 = vmatprep.mubr.bf16.mxu0 %v500
    %792 = vmatmul.mubr.bf16.gmra.mxu0 %v499
    %v793 = vpop.f32.mrf.mxu0
    %v794 = vadd.f32 0.0, %v793
    %v795 = vpop.f32.mrf.mxu0
    %v796 = vpop.f32.mrf.mxu0
    %v797 = vadd.f32 0.0, %v796
    %v798 = vpop.f32.mrf.mxu0
    %799 = vdwg.mxu0
    %800 = vmatprep.subr.bf16.mxu0 0
    %801 = vmatpush1.bf16.msra.mxu0 %v718
    %802 = vmatprep.subr.bf16.mxu0 0
    %803 = vmatpush1.bf16.msra.mxu0 %v717
    %804 = vmatprep.subr.bf16.mxu0 0
    %805 = vmatpush1.bf16.msra.mxu0 %v716
    %806 = vmatprep.subr.bf16.mxu0 0
    %807 = vmatpush1.bf16.msra.mxu0 %v715
    %808 = vmatprep.subr.bf16.mxu0 0
    %809 = vmatpush1.bf16.msra.mxu0 %v714
    %810 = vmatprep.subr.bf16.mxu0 0
    %811 = vmatpush1.bf16.msra.mxu0 %v713
    %812 = vmatprep.subr.bf16.mxu0 0
    %813 = vmatpush1.bf16.msra.mxu0 %v712
    %814 = vmatprep.subr.bf16.mxu0 0
    %815 = vmatpush1.bf16.msra.mxu0 %v711
    %816 = vmatprep.subr.bf16.mxu0 0
    %817 = vmatpush2.bf16.msra.mxu0 %v726
    %818 = vmatprep.subr.bf16.mxu0 0
    %819 = vmatpush2.bf16.msra.mxu0 %v725
    %820 = vmatprep.subr.bf16.mxu0 0
    %821 = vmatpush2.bf16.msra.mxu0 %v724
    %822 = vmatprep.subr.bf16.mxu0 0
    %823 = vmatpush2.bf16.msra.mxu0 %v723
    %824 = vmatprep.subr.bf16.mxu0 0
    %825 = vmatpush2.bf16.msra.mxu0 %v722
    %826 = vmatprep.subr.bf16.mxu0 0
    %827 = vmatpush2.bf16.msra.mxu0 %v721
    %828 = vmatprep.subr.bf16.mxu0 0
    %829 = vmatpush2.bf16.msra.mxu0 %v720
    %830 = vmatprep.subr.bf16.mxu0 0
    %831 = vmatpush2.bf16.msra.mxu0 %v719
    %832 = vmatprep.mubr.bf16.mxu0 %v502
    %833 = vmatmul.mubr.bf16.gmra.mxu0 %v501
    %v834 = vpop.f32.mrf.mxu0
    %v835 = vadd.f32 %v794, %v834
    %v836 = vpop.f32.mrf.mxu0
    %v837 = vpop.f32.mrf.mxu0
    %v838 = vadd.f32 %v797, %v837
    %v839 = vpop.f32.mrf.mxu0
    %840 = vdwg.mxu0
    %v841 = vadd.f32 %v91, %v835
    %v842 = vadd.f32 %v92, %v838
    %v843 = vlaneseq
    %v844 = vshrl.u32 %v843, 7
    %v845 = vsub.s32 2, %v844
    %v846 = vrot.slane %v93, %v845
    %v847 = vadd.f32 %v841, %v846
    %v848 = vadd.f32 %v842, %v846
    %v849 = vld [vmem:[#allocation10] sm:$0xff]
    %v850 = vld [vmem:[#allocation10 + $0x8] sm:$0xff]
    %v851 = vadd.f32 %v847, %v849
    %v852 = vadd.f32 %v848, %v850
    %853 = vst [vmem:[#allocation11] sm:$0xff] %v851
    %854 = vst [vmem:[#allocation11 + $0x8] sm:$0xff] %v852
    // Predicated region
    $region46: #{tpu_custom_call.1} parent=1 // pred_check
      _
    $region47: #{tpu_custom_call.1} parent=1 // pred_check_branch
      %856 = sbr.rel (0) target = $region49
    $region48: #{tpu_custom_call.1} parent=1 // pred_region
      %s858 = ssub.s32 256, 256
      %859 = vsyncadd [#allocation4], %s858
      %s860 = sshll.u32 [#allocation11], 4
      %s861 = int_to_ptr.vmem [resolvable:$true] %s860
      %866 = dma.vmem_to_hbm [thread:$0]  %s861, 256, %s6, [#allocation4], 128, 128, 8
    $region49: #{tpu_custom_call.1} parent=1 // pred_fallthru
      _
    // Predicated region
    $region50: #{tpu_custom_call.1} parent=1 // pred_check
      _
    $region51: #{tpu_custom_call.1} parent=1 // pred_check_branch
      %868 = sbr.rel (0) target = $region53
    $region52: #{tpu_custom_call.1} parent=1 // pred_region
      %869 = dma.done [#allocation4], 256
    $region53: #{tpu_custom_call.1} parent=1 // pred_fallthru
      _
    %870 = vsyncpa [#allocation3], 1
    %871 = vsyncpa [#allocation6], 1
    %872 = vsyncpa [#allocation9], 1
    %873 = vsyncpa [#allocation4], 1

</llo_original>
